<compile_context>
chip_gen: v7x
topology: tpu7x:2x2x1
jax: 0.10.0
libtpu: 0.0.40
codegen_flags: <defaults>
</compile_context>

<pallas_src>
import jax
import jax.numpy as jnp
from jax.experimental import pallas as pl
from jax.experimental.pallas import tpu as pltpu

LANE = 128
SUBLANE = 8


def _round_up(n, m):
    return (n + m - 1) // m * m


def decoder_kernel(x_ref, w1_ref, b1_ref, w2_ref, b2_ref, out_ref):
    # Hidden linear layer (MXU, f32 accumulate).
    h = jnp.dot(x_ref[...], w1_ref[...], preferred_element_type=jnp.float32)
    h = h + b1_ref[...]                       # (1, inter_p) broadcasts over batch tile

    # Dropout applied to a tensor of ones, then multiplied in: with p=0.0
    # (module default / eval mode) this is exactly multiplication by ones.
    # TODO(synk): training-mode dropout (p>0) needs pltpu.prng_seed +
    #             pltpu.prng_random_bits mask with 1/(1-p) scaling.

    # LeakyReLU, negative_slope = 0.01 (VPU, f32).
    h = jnp.where(h >= 0, h, jnp.float32(0.01) * h)

    # Output linear layer (MXU). Cast h to the weight dtype (no-op for f32).
    y = jnp.dot(h.astype(w2_ref.dtype), w2_ref[...],
                preferred_element_type=jnp.float32)
    out_ref[...] = (y + b2_ref[...]).astype(out_ref.dtype)


def decoder_forward(x, w1, b1, w2, b2, *, tb=1024, use_bf16=False,
                    vmem_limit_bytes=None):
    """leaky_relu(x @ w1 + b1) @ w2 + b2.

    x:  (B, code_dim) f32
    w1: (code_dim, inter_dim)   (transposed vs. PyTorch nn.Linear.weight)
    b1: (inter_dim,) or (1, inter_dim)
    w2: (inter_dim, orig_dim)
    b2: (orig_dim,) or (1, orig_dim)
    returns (B, orig_dim) f32
    """
    B, code_dim = x.shape
    inter_dim = w1.shape[1]
    orig_dim = w2.shape[1]

    # Biases stay f32 (tiny); weights padded only along the hidden dim so the
    # intermediate activation is lane-dense. x / output remain unpadded.
    id_p = _round_up(inter_dim, LANE)
    w1_p = jnp.zeros((code_dim, id_p), w1.dtype).at[:, :inter_dim].set(w1)
    b1_p = jnp.zeros((1, id_p), jnp.float32).at[:, :inter_dim].set(
        jnp.reshape(b1, (1, inter_dim)).astype(jnp.float32))
    w2_p = jnp.zeros((id_p, orig_dim), w2.dtype).at[:inter_dim, :].set(w2)
    b2_p = jnp.reshape(b2, (1, orig_dim)).astype(jnp.float32)

    if use_bf16:
        # bf16 MXU inputs (v6e/v7x native); accumulation stays f32 in-kernel.
        x = x.astype(jnp.bfloat16)
        w1_p = w1_p.astype(jnp.bfloat16)
        w2_p = w2_p.astype(jnp.bfloat16)

    # Batch tile: big enough to amortize per-step overhead, shrink
    # (sublane-aligned) for tiny batches so we never over-pad the toy case.
    tb = max(SUBLANE, (tb // SUBLANE) * SUBLANE)
    tb = min(tb, _round_up(B, SUBLANE))
    grid = (pl.cdiv(B, tb),)   # partial tail tile handled by Pallas (masked writes)

    flops = 2 * B * (code_dim * id_p + id_p * orig_dim)
    bytes_accessed = (
        x.size * x.dtype.itemsize
        + w1_p.size * w1_p.dtype.itemsize + b1_p.size * 4
        + w2_p.size * w2_p.dtype.itemsize + b2_p.size * 4
        + B * orig_dim * 4)

    compiler_kwargs = dict(dimension_semantics=("parallel",))
    if vmem_limit_bytes is not None:   # v5e insurance for very large tb only
        compiler_kwargs["vmem_limit_bytes"] = vmem_limit_bytes

    out = pl.pallas_call(
        decoder_kernel,
        out_shape=jax.ShapeDtypeStruct((B, orig_dim), jnp.float32),
        grid=grid,
        in_specs=[
            # Activations: pipelined over the batch grid axis, unpadded lanes.
            pl.BlockSpec((tb, code_dim), lambda i: (i, 0)),
            # Weights/biases: constant index_map -> resident in VMEM.
            pl.BlockSpec((code_dim, id_p), lambda i: (0, 0)),
            pl.BlockSpec((1, id_p), lambda i: (0, 0)),
            pl.BlockSpec((id_p, orig_dim), lambda i: (0, 0)),
            pl.BlockSpec((1, orig_dim), lambda i: (0, 0)),
        ],
        out_specs=pl.BlockSpec((tb, orig_dim), lambda i: (i, 0)),
        compiler_params=pltpu.CompilerParams(**compiler_kwargs),
        cost_estimate=pl.CostEstimate(flops=flops, transcendentals=0,
                                      bytes_accessed=bytes_accessed),
    )(x, w1_p, b1_p, w2_p, b2_p)
    return out


def reference_forward(x, w1, b1, w2, b2):
    h = x @ w1 + jnp.reshape(b1, (1, -1))
    h = jnp.where(h >= 0, h, 0.01 * h)
    return h @ w2 + jnp.reshape(b2, (1, -1))


def _make_params(key, code_dim, inter_dim, orig_dim):
    k_w1, k_b1, k_w2, k_b2 = jax.random.split(key, 4)
    lim1 = 1.0 / (code_dim ** 0.5)
    lim2 = 1.0 / (inter_dim ** 0.5)
    w1 = jax.random.uniform(k_w1, (code_dim, inter_dim), jnp.float32, -lim1, lim1)
    b1 = jax.random.uniform(k_b1, (1, inter_dim), jnp.float32, -lim1, lim1)
    w2 = jax.random.uniform(k_w2, (inter_dim, orig_dim), jnp.float32, -lim2, lim2)
    b2 = jax.random.uniform(k_b2, (1, orig_dim), jnp.float32, -lim2, lim2)
    return w1, b1, w2, b2


if __name__ == "__main__":
    key = jax.random.PRNGKey(0)
    k_p, k_x1, k_x2 = jax.random.split(key, 3)

    # Shapes consistent with the module: code_dim -> inter_dim -> orig_dim.
    code_dim, inter_dim, orig_dim = 16, 32, 64
    w1, b1, w2, b2 = _make_params(k_p, code_dim, inter_dim, orig_dim)

    # 1) Small batch: single tile, unpadded x / output lanes.
    B1 = 8
    x1 = jax.random.normal(k_x1, (B1, code_dim), dtype=jnp.float32)
    out1 = jax.block_until_ready(decoder_forward(x1, w1, b1, w2, b2))
    ref1 = reference_forward(x1, w1, b1, w2, b2)
    assert out1.shape == (B1, orig_dim)
    assert jnp.allclose(out1, ref1, atol=1e-5, rtol=1e-5)

    # 2) Batch not a multiple of the tile: exercises batch gridding, resident
    #    weights across grid steps, and the masked partial tail tile.
    B2 = 200
    x2 = jax.random.normal(k_x2, (B2, code_dim), dtype=jnp.float32)
    out2 = jax.block_until_ready(decoder_forward(x2, w1, b1, w2, b2, tb=64))
    ref2 = reference_forward(x2, w1, b1, w2, b2)
    assert out2.shape == (B2, orig_dim)
    assert jnp.allclose(out2, ref2, atol=1e-5, rtol=1e-5)

    print("KERNEL_OK")
</pallas_src>

<mosaic_0001>
module attributes {stable_mosaic.version = 11 : i64} {
  func.func @decoder_kernel(%arg0: i32, %arg1: memref<8x16xf32, #tpu.memory_space<vmem>>, %arg2: memref<16x128xf32, #tpu.memory_space<vmem>>, %arg3: memref<1x128xf32, #tpu.memory_space<vmem>>, %arg4: memref<128x64xf32, #tpu.memory_space<vmem>>, %arg5: memref<1x64xf32, #tpu.memory_space<vmem>>, %arg6: memref<8x64xf32, #tpu.memory_space<vmem>>) attributes {dimension_semantics = [#tpu.dimension_semantics<parallel>], iteration_bounds = array<i64: 1>, scalar_prefetch = 0 : i64, scratch_operands = 0 : i64, tpu.core_type = #tpu.core_type<tc>, window_params = [{transform_indices = @transform_0, window_bounds = array<i64: 8, 16>}, {pipeline_mode = #tpu.pipeline_mode<synchronous>, transform_indices = @transform_1, window_bounds = array<i64: 16, 128>}, {pipeline_mode = #tpu.pipeline_mode<synchronous>, transform_indices = @transform_2, window_bounds = array<i64: 1, 128>}, {pipeline_mode = #tpu.pipeline_mode<synchronous>, transform_indices = @transform_3, window_bounds = array<i64: 128, 64>}, {pipeline_mode = #tpu.pipeline_mode<synchronous>, transform_indices = @transform_4, window_bounds = array<i64: 1, 64>}, {transform_indices = @transform_5, window_bounds = array<i64: 8, 64>}]} {
    %c0 = arith.constant 0 : index
    %c0_0 = arith.constant 0 : index
    %0 = vector.load %arg1[%c0, %c0_0] : memref<8x16xf32, #tpu.memory_space<vmem>>, vector<8x16xf32>
    %c0_1 = arith.constant 0 : index
    %c0_2 = arith.constant 0 : index
    %1 = vector.load %arg2[%c0_1, %c0_2] : memref<16x128xf32, #tpu.memory_space<vmem>>, vector<16x128xf32>
    %cst = arith.constant dense<0.000000e+00> : vector<8x128xf32>
    %2 = tpu.matmul %0, %1, %cst {dimension_numbers = #tpu.dot_dimension_numbers<[1], [0], [0], [1], [0, 0, 1, 1], [], []>} : vector<8x16xf32>, vector<16x128xf32>, vector<8x128xf32> -> vector<8x128xf32>
    %c0_3 = arith.constant 0 : index
    %c0_4 = arith.constant 0 : index
    %3 = vector.load %arg3[%c0_3, %c0_4] : memref<1x128xf32, #tpu.memory_space<vmem>>, vector<1x128xf32>
    %4 = vector.broadcast %3 : vector<1x128xf32> to vector<8x128xf32>
    %5 = arith.addf %2, %4 : vector<8x128xf32>
    %cst_5 = arith.constant 0.000000e+00 : f32
    %6 = vector.broadcast %cst_5 : f32 to vector<8x128xf32>
    %7 = arith.cmpf oge, %5, %6 : vector<8x128xf32>
    %cst_6 = arith.constant 0.00999999977 : f32
    %8 = vector.broadcast %cst_6 : f32 to vector<8x128xf32>
    %9 = arith.mulf %8, %5 : vector<8x128xf32>
    %10 = arith.select %7, %5, %9 : vector<8x128xi1>, vector<8x128xf32>
    %c0_7 = arith.constant 0 : index
    %c0_8 = arith.constant 0 : index
    %11 = vector.load %arg4[%c0_7, %c0_8] : memref<128x64xf32, #tpu.memory_space<vmem>>, vector<128x64xf32>
    %cst_9 = arith.constant dense<0.000000e+00> : vector<8x64xf32>
    %12 = tpu.matmul %10, %11, %cst_9 {dimension_numbers = #tpu.dot_dimension_numbers<[1], [0], [0], [1], [0, 0, 1, 1], [], []>} : vector<8x128xf32>, vector<128x64xf32>, vector<8x64xf32> -> vector<8x64xf32>
    %c0_10 = arith.constant 0 : index
    %c0_11 = arith.constant 0 : index
    %13 = vector.load %arg5[%c0_10, %c0_11] : memref<1x64xf32, #tpu.memory_space<vmem>>, vector<1x64xf32>
    %14 = vector.broadcast %13 : vector<1x64xf32> to vector<8x64xf32>
    %15 = arith.addf %12, %14 : vector<8x64xf32>
    %c0_12 = arith.constant 0 : index
    %c0_13 = arith.constant 0 : index
    %16 = vector.load %arg6[%c0_12, %c0_13] : memref<8x64xf32, #tpu.memory_space<vmem>>, vector<8x64xf32>
    tpu.vector_store %arg6[%c0_12, %c0_13], %15 {strides = array<i32>} : memref<8x64xf32, #tpu.memory_space<vmem>>, vector<8x64xf32>,
    return
  }
  func.func @transform_0(%arg0: i32) -> (i32, i32) {
    %c0_i32 = arith.constant 0 : i32
    %c0_i32_0 = arith.constant 0 : i32
    return %arg0, %c0_i32 : i32, i32
  }
  func.func @transform_1(%arg0: i32) -> (i32, i32) {
    %c0_i32 = arith.constant 0 : i32
    %c0_i32_0 = arith.constant 0 : i32
    %c0_i32_1 = arith.constant 0 : i32
    return %c0_i32, %c0_i32_0 : i32, i32
  }
  func.func @transform_2(%arg0: i32) -> (i32, i32) {
    %c0_i32 = arith.constant 0 : i32
    %c0_i32_0 = arith.constant 0 : i32
    %c0_i32_1 = arith.constant 0 : i32
    return %c0_i32, %c0_i32_0 : i32, i32
  }
  func.func @transform_3(%arg0: i32) -> (i32, i32) {
    %c0_i32 = arith.constant 0 : i32
    %c0_i32_0 = arith.constant 0 : i32
    %c0_i32_1 = arith.constant 0 : i32
    return %c0_i32, %c0_i32_0 : i32, i32
  }
  func.func @transform_4(%arg0: i32) -> (i32, i32) {
    %c0_i32 = arith.constant 0 : i32
    %c0_i32_0 = arith.constant 0 : i32
    %c0_i32_1 = arith.constant 0 : i32
    return %c0_i32, %c0_i32_0 : i32, i32
  }
  func.func @transform_5(%arg0: i32) -> (i32, i32) {
    %c0_i32 = arith.constant 0 : i32
    %c0_i32_0 = arith.constant 0 : i32
    return %arg0, %c0_i32 : i32, i32
  }
}

</mosaic_0001>

<llo_original>
// kernel: tpu_custom_call.1
$region0: #{tpu_custom_call.1}
  #allocation0 [shape = 'u32[]', space=smem, size = 0x4, offset = 0x4, fixed_abs, tag = 'smem constant byte address 0x4 - core index']
  #allocation1 [shape = 'u32[144,128]{1,0:T(1,128)}', space=vmem, size = 0x12000, scoped, tag = 'internal scratch']
  %s0 = inlined_call_operand.vmem [shape: f32[8,16], index: 0, kind: input, shape index: {}]
  %s1 = inlined_call_operand.vmem [shape: f32[16,128], index: 1, kind: input, shape index: {}]
  %s2 = inlined_call_operand.vmem [shape: f32[1,128], index: 2, kind: input, shape index: {}]
  %s3 = inlined_call_operand.vmem [shape: f32[128,64], index: 3, kind: input, shape index: {}]
  %s4 = inlined_call_operand.vmem [shape: f32[1,64], index: 4, kind: input, shape index: {}]
  %s5 = inlined_call_operand.hbm [shape: f32[8,64], index: 5, kind: output, shape index: {}]
  %s6 = sld [smem:[#allocation0]]
  $region30: #{tpu_custom_call.1} parent=0
    _
  %s8 = ssub.s32 1, %s6
  %s9 = scalar_select 0, %s8, %s6
  $region1: #{tpu_custom_call.1} parent=0
    #allocation2 [shape = 'u8[4096]{0}', space=vmem, size = 0x1000, scoped, tag = 'output window, operand 0, single buffered']
    #allocation3 [shape = 's32[1]{0}', space=sflag, size = 0x4, scoped, tag = 'scoped memory for tpu_custom_call.1']
    %10 = vsyncpa [#allocation3], 0
    // Predicated region
    $region2: #{tpu_custom_call.1} parent=1 // pred_check
      _
    $region3: #{tpu_custom_call.1} parent=1 // pred_check_branch
      %12 = sbr.rel (0) target = $region5
    $region4: #{tpu_custom_call.1} parent=1 // pred_region
      _
    $region5: #{tpu_custom_call.1} parent=1 // pred_fallthru
      _
    // Predicated region
    $region6: #{tpu_custom_call.1} parent=1 // pred_check
      _
    $region7: #{tpu_custom_call.1} parent=1 // pred_check_branch
      %14 = sbr.rel (0) target = $region9
    $region8: #{tpu_custom_call.1} parent=1 // pred_region
      _
    $region9: #{tpu_custom_call.1} parent=1 // pred_fallthru
      _
    // Predicated region
    $region10: #{tpu_custom_call.1} parent=1 // pred_check
      _
    $region11: #{tpu_custom_call.1} parent=1 // pred_check_branch
      %16 = sbr.rel (0) target = $region13
    $region12: #{tpu_custom_call.1} parent=1 // pred_region
      _
    $region13: #{tpu_custom_call.1} parent=1 // pred_fallthru
      _
    // Predicated region
    $region14: #{tpu_custom_call.1} parent=1 // pred_check
      _
    $region15: #{tpu_custom_call.1} parent=1 // pred_check_branch
      %18 = sbr.rel (0) target = $region17
    $region16: #{tpu_custom_call.1} parent=1 // pred_region
      _
    $region17: #{tpu_custom_call.1} parent=1 // pred_fallthru
      _
    // Predicated region
    $region18: #{tpu_custom_call.1} parent=1 // pred_check
      _
    $region19: #{tpu_custom_call.1} parent=1 // pred_check_branch
      %20 = sbr.rel (0) target = $region21
    $region20: #{tpu_custom_call.1} parent=1 // pred_region
      _
    $region21: #{tpu_custom_call.1} parent=1 // pred_fallthru
      _
    %v21 = vld [vmem:[%s0] sm:$0xff]
    %v22 = vld [vmem:[%s1] sm:$0xff]
    %v23 = vld [vmem:[%s1 + $0x8] sm:$0xff]
    %v24 = vld [vmem:[%s2] sm:$0x1]
    %v26 = vlaneseq
    %v27 = vshrl.u32 %v26, 7
    %v28 = vsub.s32 0, %v27
    %v29 = vrot.slane %v24, %v28
    %vm31 = vcmask 130048
    %v33 = vsel %vm31, %v21, 0
    %35 = vmatprep.subr.mxu0 0.0
    %36 = vmatpush1.msra.mxu0 %v22
    %37 = vmatprep.subr.mxu0 0.0
    %38 = vmatpush1.msra.mxu0 %v23
    %39 = vmatprep.subr.mxu0 0.0
    %40 = vmatpush1.msra.mxu0 0.0
    %41 = vmatprep.subr.mxu0 0.0
    %42 = vmatpush1.msra.mxu0 0.0
    %43 = vmatprep.subr.mxu0 0.0
    %44 = vmatpush1.msra.mxu0 0.0
    %45 = vmatprep.subr.mxu0 0.0
    %46 = vmatpush1.msra.mxu0 0.0
    %47 = vmatprep.subr.mxu0 0.0
    %48 = vmatpush1.msra.mxu0 0.0
    %49 = vmatprep.subr.mxu0 0.0
    %50 = vmatpush1.msra.mxu0 0.0
    %51 = vmatprep.subr.mxu0 0.0
    %52 = vmatpush1.msra.mxu0 0.0
    %53 = vmatprep.subr.mxu0 0.0
    %54 = vmatpush1.msra.mxu0 0.0
    %55 = vmatprep.subr.mxu0 0.0
    %56 = vmatpush1.msra.mxu0 0.0
    %57 = vmatprep.subr.mxu0 0.0
    %58 = vmatpush1.msra.mxu0 0.0
    %59 = vmatprep.subr.mxu0 0.0
    %60 = vmatpush1.msra.mxu0 0.0
    %61 = vmatprep.subr.mxu0 0.0
    %62 = vmatpush1.msra.mxu0 0.0
    %63 = vmatprep.subr.mxu0 0.0
    %64 = vmatpush1.msra.mxu0 0.0
    %65 = vmatprep.subr.mxu0 0.0
    %66 = vmatpush1.msra.mxu0 0.0
    %67 = vmatprep.subr.mxu0 0.0
    %68 = vmatpush1.msra.mxu0 0.0
    %69 = vmatprep.subr.mxu0 0.0
    %70 = vmatpush1.msra.mxu0 0.0
    %71 = vmatprep.subr.mxu0 0.0
    %72 = vmatpush1.msra.mxu0 0.0
    %73 = vmatprep.subr.mxu0 0.0
    %74 = vmatpush1.msra.mxu0 0.0
    %75 = vmatprep.subr.mxu0 0.0
    %76 = vmatpush1.msra.mxu0 0.0
    %77 = vmatprep.subr.mxu0 0.0
    %78 = vmatpush1.msra.mxu0 0.0
    %79 = vmatprep.subr.mxu0 0.0
    %80 = vmatpush1.msra.mxu0 0.0
    %81 = vmatprep.subr.mxu0 0.0
    %82 = vmatpush1.msra.mxu0 0.0
    %83 = vmatprep.subr.mxu0 0.0
    %84 = vmatpush1.msra.mxu0 0.0
    %85 = vmatprep.subr.mxu0 0.0
    %86 = vmatpush1.msra.mxu0 0.0
    %87 = vmatprep.subr.mxu0 0.0
    %88 = vmatpush1.msra.mxu0 0.0
    %89 = vmatprep.subr.mxu0 0.0
    %90 = vmatpush1.msra.mxu0 0.0
    %91 = vmatprep.subr.mxu0 0.0
    %92 = vmatpush1.msra.mxu0 0.0
    %93 = vmatprep.subr.mxu0 0.0
    %94 = vmatpush1.msra.mxu0 0.0
    %95 = vmatprep.subr.mxu0 0.0
    %96 = vmatpush1.msra.mxu0 0.0
    %97 = vmatprep.subr.mxu0 0.0
    %98 = vmatpush1.msra.mxu0 0.0
    %99 = vmatprep.mubr.f32.mxu0 0.0
    %100 = vmatmul.mubr.f32.gmra.mrb[0].mxu0 %v33
    %v101 = vpop.f32.mrb[0].mxu0
    %v102 = vadd.f32 %v29, %v101
    %v103 = vpop.f32.mrb[0].mxu0
    %104 = vdwg.mxu0
    %vm105 = vcmp.ge.f32.partialorder %v102, 0.0
    %v106 = vmul.f32 %v102, 0.01
    %v107 = vsel %vm105, %v102, %v106
    %v108 = vld [vmem:[%s3] sm:$0xff]
    %v109 = vld [vmem:[%s3 + $0x8] sm:$0xff]
    %v110 = vld [vmem:[%s3 + $0x10] sm:$0xff]
    %v111 = vld [vmem:[%s3 + $0x18] sm:$0xff]
    %v112 = vld [vmem:[%s3 + $0x20] sm:$0xff]
    %v113 = vld [vmem:[%s3 + $0x28] sm:$0xff]
    %v114 = vld [vmem:[%s3 + $0x30] sm:$0xff]
    %v115 = vld [vmem:[%s3 + $0x38] sm:$0xff]
    %v116 = vld [vmem:[%s3 + $0x40] sm:$0xff]
    %v117 = vld [vmem:[%s3 + $0x48] sm:$0xff]
    %v118 = vld [vmem:[%s3 + $0x50] sm:$0xff]
    %v119 = vld [vmem:[%s3 + $0x58] sm:$0xff]
    %v120 = vld [vmem:[%s3 + $0x60] sm:$0xff]
    %v121 = vld [vmem:[%s3 + $0x68] sm:$0xff]
    %v122 = vld [vmem:[%s3 + $0x70] sm:$0xff]
    %v123 = vld [vmem:[%s3 + $0x78] sm:$0xff]
    %v124 = vld [vmem:[%s4] sm:$0x1]
    %v126 = vlaneseq
    %v127 = vshrl.u32 %v126, 7
    %v128 = vsub.s32 0, %v127
    %v129 = vrot.slane %v124, %v128
    %131 = vmatprep.subr.mxu0 0.0
    %132 = vmatpush1.msra.mxu0 %v108
    %133 = vmatprep.subr.mxu0 0.0
    %134 = vmatpush1.msra.mxu0 %v109
    %135 = vmatprep.subr.mxu0 0.0
    %136 = vmatpush1.msra.mxu0 %v110
    %137 = vmatprep.subr.mxu0 0.0
    %138 = vmatpush1.msra.mxu0 %v111
    %139 = vmatprep.subr.mxu0 0.0
    %140 = vmatpush1.msra.mxu0 %v112
    %141 = vmatprep.subr.mxu0 0.0
    %142 = vmatpush1.msra.mxu0 %v113
    %143 = vmatprep.subr.mxu0 0.0
    %144 = vmatpush1.msra.mxu0 %v114
    %145 = vmatprep.subr.mxu0 0.0
    %146 = vmatpush1.msra.mxu0 %v115
    %147 = vmatprep.subr.mxu0 0.0
    %148 = vmatpush1.msra.mxu0 %v116
    %149 = vmatprep.subr.mxu0 0.0
    %150 = vmatpush1.msra.mxu0 %v117
    %151 = vmatprep.subr.mxu0 0.0
    %152 = vmatpush1.msra.mxu0 %v118
    %153 = vmatprep.subr.mxu0 0.0
    %154 = vmatpush1.msra.mxu0 %v119
    %155 = vmatprep.subr.mxu0 0.0
    %156 = vmatpush1.msra.mxu0 %v120
    %157 = vmatprep.subr.mxu0 0.0
    %158 = vmatpush1.msra.mxu0 %v121
    %159 = vmatprep.subr.mxu0 0.0
    %160 = vmatpush1.msra.mxu0 %v122
    %161 = vmatprep.subr.mxu0 0.0
    %162 = vmatpush1.msra.mxu0 %v123
    %163 = vmatprep.subr.mxu0 0.0
    %164 = vmatpush1.msra.mxu0 0.0
    %165 = vmatprep.subr.mxu0 0.0
    %166 = vmatpush1.msra.mxu0 0.0
    %167 = vmatprep.subr.mxu0 0.0
    %168 = vmatpush1.msra.mxu0 0.0
    %169 = vmatprep.subr.mxu0 0.0
    %170 = vmatpush1.msra.mxu0 0.0
    %171 = vmatprep.subr.mxu0 0.0
    %172 = vmatpush1.msra.mxu0 0.0
    %173 = vmatprep.subr.mxu0 0.0
    %174 = vmatpush1.msra.mxu0 0.0
    %175 = vmatprep.subr.mxu0 0.0
    %176 = vmatpush1.msra.mxu0 0.0
    %177 = vmatprep.subr.mxu0 0.0
    %178 = vmatpush1.msra.mxu0 0.0
    %179 = vmatprep.subr.mxu0 0.0
    %180 = vmatpush1.msra.mxu0 0.0
    %181 = vmatprep.subr.mxu0 0.0
    %182 = vmatpush1.msra.mxu0 0.0
    %183 = vmatprep.subr.mxu0 0.0
    %184 = vmatpush1.msra.mxu0 0.0
    %185 = vmatprep.subr.mxu0 0.0
    %186 = vmatpush1.msra.mxu0 0.0
    %187 = vmatprep.subr.mxu0 0.0
    %188 = vmatpush1.msra.mxu0 0.0
    %189 = vmatprep.subr.mxu0 0.0
    %190 = vmatpush1.msra.mxu0 0.0
    %191 = vmatprep.subr.mxu0 0.0
    %192 = vmatpush1.msra.mxu0 0.0
    %193 = vmatprep.subr.mxu0 0.0
    %194 = vmatpush1.msra.mxu0 0.0
    %195 = vmatprep.mubr.f32.mxu0 0.0
    %196 = vmatmul.mubr.f32.gmra.mrb[0].mxu0 %v107
    %v197 = vpop.f32.mrb[0].mxu0
    %v198 = vadd.f32 %v129, %v197
    %v199 = vpop.f32.mrb[0].mxu0
    %200 = vdwg.mxu0
    %vm201 = vcmask 523264
    %202 = vst.msk [vmem:[#allocation2] sm:$0xff] %vm201, %v198
    // Predicated region
    $region22: #{tpu_custom_call.1} parent=1 // pred_check
      _
    $region23: #{tpu_custom_call.1} parent=1 // pred_check_branch
      %204 = sbr.rel (0) target = $region25
    $region24: #{tpu_custom_call.1} parent=1 // pred_region
      %s206 = ssub.s32 128, 128
      %207 = vsyncadd [#allocation3], %s206
      %s209 = sshll.u32 [#allocation2], 4
      %s210 = int_to_ptr.vmem [resolvable:$true] %s209
      %212 = dma.vmem_to_hbm [thread:$0]  %s210, 128, %s5, [#allocation3]
    $region25: #{tpu_custom_call.1} parent=1 // pred_fallthru
      _
    // Predicated region
    $region26: #{tpu_custom_call.1} parent=1 // pred_check
      _
    $region27: #{tpu_custom_call.1} parent=1 // pred_check_branch
      %214 = sbr.rel (0) target = $region29
    $region28: #{tpu_custom_call.1} parent=1 // pred_region
      %215 = dma.done [#allocation3], 128
    $region29: #{tpu_custom_call.1} parent=1 // pred_fallthru
      _
    %216 = vsyncpa [#allocation3], 1

</llo_original>
